<compile_context>
chip_gen: v6e
topology: v6e:2x2x1
jax: 0.10.0
libtpu: 0.0.40
codegen_flags: <defaults>
</compile_context>

<pallas_src>
import functools

import jax
import jax.numpy as jnp
from jax.experimental import pallas as pl
from jax.experimental.pallas import tpu as pltpu


def _round_up(n, m):
    return ((n + m - 1) // m) * m


def _cdiv(a, b):
    return -(-a // b)


def relation_network_kernel(approx_sigmoid, x_t_ref, w1_t_ref, b1_ref, w2_ref,
                            b2_ref, o_ref):
    # fc1: h^T = relu(w1^T @ x^T + b1), accumulated in f32 on the MXU.
    h = jnp.dot(w1_t_ref[...], x_t_ref[...],
                preferred_element_type=jnp.float32)            # (Hp, TB)
    h = jnp.maximum(h + b1_ref[...], 0.0)                      # (Hp, 1) lane-broadcast

    # fc2: y = w2_row @ h^T + b2  ->  lane-dense (1, TB) tile (unmasked stores).
    y = jnp.dot(w2_ref[...], h, preferred_element_type=jnp.float32)
    y = y + b2_ref[0, 0]                                       # scalar bias from SMEM

    # sigmoid: exp on the EUP; approx reciprocal also on the EUP when allowed.
    o_ref[...] = pl.reciprocal(1.0 + jnp.exp(-y),
                               approx=approx_sigmoid).astype(o_ref.dtype)


def _choose_batch_tile(B, Kp, Hp, in_itemsize, tb_max):
    # Per-batch-row VMEM that scales with TB: double-buffered x^T tile,
    # f32 activation temporaries, double-buffered (sublane-padded) output row.
    per_row = 2 * Kp * in_itemsize + 2 * Hp * 4 + 2 * 8 * 4
    cap = min(tb_max, max(128, (24 << 20) // per_row))
    cap = max(128, (cap // 128) * 128)
    n_steps = _cdiv(B, cap)
    if B >= 256:
        n_steps = max(n_steps, 2)          # give both v7x TensorCores work
    return min(cap, _round_up(_cdiv(B, n_steps), 128))


def _vmem_bytes(TB, Kp, Hp, in_itemsize):
    x_stream = 2 * TB * Kp * in_itemsize   # double-buffered streamed x^T tiles
    w1_res = 2 * Hp * Kp * in_itemsize     # resident w1^T (2 buffers allocated)
    b1_res = 2 * Hp * 128 * 4              # (Hp, 1) f32, lane-padded to 128
    w2_res = 2 * 8 * Hp * 4                # (1, Hp) f32, sublane-padded to 8
    out_str = 2 * 8 * TB * 4               # (1, TB) f32, sublane-padded to 8
    h_tmp = 2 * Hp * TB * 4                # fc1 / relu activation temporaries
    return x_stream + w1_res + b1_res + w2_res + out_str + h_tmp


def relation_network(x, w1, b1, w2, b2, *, compute_dtype=jnp.bfloat16, tb_max=8192):
    """x: [B, input_size]; w1: [input_size, hidden]; b1: [hidden]-ish;
    w2: [hidden, 1] or [hidden]; b2: scalar / [1] / [1,1]  ->  [B, 1] float32."""
    B, K = x.shape
    Kw, H = w1.shape
    assert K == Kw, (K, Kw)
    compute_dtype = jnp.dtype(compute_dtype)
    in_itemsize = compute_dtype.itemsize

    Kp = _round_up(K, 128)
    Hp = _round_up(H, 128)
    TB = _choose_batch_tile(B, Kp, Hp, in_itemsize, tb_max)
    Bp = _round_up(B, TB)
    grid = (Bp // TB,)

    # ---- host-side prep (one fused pass each; skipped when already aligned) ----
    if (K, B) == (Kp, Bp) and x.dtype == compute_dtype:
        x_t = x.T                                                    # (Kp, Bp)
    else:
        x_t = jnp.zeros((Kp, Bp), compute_dtype).at[:K, :B].set(
            x.T.astype(compute_dtype))
    if (H, K) == (Hp, Kp) and w1.dtype == compute_dtype:
        w1_t = w1.T                                                  # (Hp, Kp)
    else:
        w1_t = jnp.zeros((Hp, Kp), compute_dtype).at[:H, :K].set(
            w1.T.astype(compute_dtype))
    b1_col = jnp.zeros((Hp, 1), jnp.float32).at[:H, 0].set(
        jnp.reshape(jnp.asarray(b1, jnp.float32), (H,)))
    w2_row = jnp.zeros((1, Hp), jnp.float32).at[0, :H].set(
        jnp.reshape(jnp.asarray(w2, jnp.float32), (H,)))
    b2_s = jnp.reshape(jnp.asarray(b2, jnp.float32), (1, 1))

    vmem_limit = int(min(64 << 20,
                         max(32 << 20,
                             1.5 * _vmem_bytes(TB, Kp, Hp, in_itemsize) + (2 << 20))))

    approx_sigmoid = compute_dtype == jnp.dtype(jnp.bfloat16)
    kernel = functools.partial(relation_network_kernel, approx_sigmoid)

    y_t = pl.pallas_call(
        kernel,
        out_shape=jax.ShapeDtypeStruct((1, Bp), jnp.float32),
        grid=grid,
        in_specs=[
            pl.BlockSpec((Kp, TB), lambda i: (0, i)),    # x^T: streamed over batch
            pl.BlockSpec((Hp, Kp), lambda i: (0, 0)),    # w1^T: grid-invariant
            pl.BlockSpec((Hp, 1), lambda i: (0, 0)),     # b1 column: grid-invariant
            pl.BlockSpec((1, Hp), lambda i: (0, 0)),     # w2 row: grid-invariant
            pl.BlockSpec(memory_space=pltpu.SMEM),       # b2: scalar in SMEM
        ],
        out_specs=pl.BlockSpec((1, TB), lambda i: (0, i)),   # lane-dense output
        compiler_params=pltpu.CompilerParams(
            dimension_semantics=("parallel",),
            vmem_limit_bytes=vmem_limit),
    )(x_t, w1_t, b1_col, w2_row, b2_s)

    # Back to the module's [B, 1] layout (drop batch padding, transpose).
    return y_t[0, :B].reshape(B, 1)


def reference(x, w1, b1, w2, b2):
    h = jnp.maximum(x @ w1 + jnp.reshape(b1, (1, -1)), 0.0)
    y = h @ jnp.reshape(w2, (-1, 1)) + jnp.reshape(b2, (1, 1))
    return 1.0 / (1.0 + jnp.exp(-y))


if __name__ == "__main__":
    # Small shapes consistent with the module: batch=16, input_size=32, hidden=32.
    B, input_size, hidden_size = 16, 32, 32
    key = jax.random.PRNGKey(0)
    kx, kw1, kb1, kw2, kb2 = jax.random.split(key, 5)

    bound1 = 1.0 / (input_size ** 0.5)
    bound2 = 1.0 / (hidden_size ** 0.5)
    x = jax.random.normal(kx, (B, input_size), dtype=jnp.float32)
    w1 = jax.random.uniform(kw1, (input_size, hidden_size), jnp.float32, -bound1, bound1)
    b1 = jax.random.uniform(kb1, (hidden_size,), jnp.float32, -bound1, bound1)
    w2 = jax.random.uniform(kw2, (hidden_size, 1), jnp.float32, -bound2, bound2)
    b2 = jax.random.uniform(kb2, (1,), jnp.float32, -bound2, bound2)

    ref = reference(x, w1, b1, w2, b2)

    # Exact f32 path: strict check against the f32 reference.
    out_f32 = jax.block_until_ready(
        relation_network(x, w1, b1, w2, b2, compute_dtype=jnp.float32))
    assert out_f32.shape == (B, 1), out_f32.shape
    assert jnp.allclose(out_f32, ref, atol=1e-5, rtol=1e-5), (
        "f32 mismatch vs reference", float(jnp.max(jnp.abs(out_f32 - ref))))

    # Default fast path: bf16 MXU inputs, f32 accumulation (bf16-level tolerance).
    out_bf16 = jax.block_until_ready(relation_network(x, w1, b1, w2, b2))
    assert out_bf16.shape == (B, 1), out_bf16.shape
    assert jnp.allclose(out_bf16, ref, atol=2e-2, rtol=2e-2), (
        "bf16 mismatch vs reference", float(jnp.max(jnp.abs(out_bf16 - ref))))

    # Unaligned, multi-tile shape: exercises padding and the multi-step
    # "parallel" batch grid (TB=256, 2 grid steps).
    B2, in2, hid2 = 300, 40, 24
    k2 = jax.random.split(key, 6)
    x2 = jax.random.normal(k2[0], (B2, in2), dtype=jnp.float32)
    w1_2 = jax.random.uniform(k2[1], (in2, hid2), jnp.float32, -0.15, 0.15)
    b1_2 = jax.random.uniform(k2[2], (hid2,), jnp.float32, -0.15, 0.15)
    w2_2 = jax.random.uniform(k2[3], (hid2, 1), jnp.float32, -0.2, 0.2)
    b2_2 = jax.random.uniform(k2[4], (1,), jnp.float32, -0.2, 0.2)
    out2 = jax.block_until_ready(relation_network(x2, w1_2, b1_2, w2_2, b2_2))
    ref2 = reference(x2, w1_2, b1_2, w2_2, b2_2)
    assert out2.shape == (B2, 1), out2.shape
    assert jnp.allclose(out2, ref2, atol=2e-2, rtol=2e-2), (
        "multi-tile mismatch vs reference", float(jnp.max(jnp.abs(out2 - ref2))))

    print("KERNEL_OK")
</pallas_src>

<mosaic_0001>
module attributes {stable_mosaic.version = 11 : i64} {
  func.func @relation_network_kernel(%arg0: i32, %arg1: memref<128x128xf32, #tpu.memory_space<vmem>>, %arg2: memref<128x128xf32, #tpu.memory_space<vmem>>, %arg3: memref<128x1xf32, #tpu.memory_space<vmem>>, %arg4: memref<1x128xf32, #tpu.memory_space<vmem>>, %arg5: memref<1x1xf32, #tpu.memory_space<smem>>, %arg6: memref<1x128xf32, #tpu.memory_space<vmem>>) attributes {dimension_semantics = [#tpu.dimension_semantics<parallel>], iteration_bounds = array<i64: 1>, scalar_prefetch = 0 : i64, scratch_operands = 0 : i64, tpu.core_type = #tpu.core_type<tc>, window_params = [{transform_indices = @transform_0, window_bounds = array<i64: 128, 128>}, {pipeline_mode = #tpu.pipeline_mode<synchronous>, transform_indices = @transform_1, window_bounds = array<i64: 128, 128>}, {pipeline_mode = #tpu.pipeline_mode<synchronous>, transform_indices = @transform_2, window_bounds = array<i64: 128, 1>}, {pipeline_mode = #tpu.pipeline_mode<synchronous>, transform_indices = @transform_3, window_bounds = array<i64: 1, 128>}, {transform_indices = @transform_4, window_bounds = array<i64: 1, 1>}, {transform_indices = @transform_5, window_bounds = array<i64: 1, 128>}]} {
    %c0 = arith.constant 0 : index
    %c0_0 = arith.constant 0 : index
    %0 = vector.load %arg2[%c0, %c0_0] : memref<128x128xf32, #tpu.memory_space<vmem>>, vector<128x128xf32>
    %c0_1 = arith.constant 0 : index
    %c0_2 = arith.constant 0 : index
    %1 = vector.load %arg1[%c0_1, %c0_2] : memref<128x128xf32, #tpu.memory_space<vmem>>, vector<128x128xf32>
    %cst = arith.constant dense<0.000000e+00> : vector<128x128xf32>
    %2 = tpu.matmul %0, %1, %cst {dimension_numbers = #tpu.dot_dimension_numbers<[1], [0], [0], [1], [0, 0, 1, 1], [], []>} : vector<128x128xf32>, vector<128x128xf32>, vector<128x128xf32> -> vector<128x128xf32>
    %c0_3 = arith.constant 0 : index
    %c0_4 = arith.constant 0 : index
    %3 = vector.load %arg3[%c0_3, %c0_4] : memref<128x1xf32, #tpu.memory_space<vmem>>, vector<128x1xf32>
    %4 = vector.broadcast %3 : vector<128x1xf32> to vector<128x128xf32>
    %5 = arith.addf %2, %4 : vector<128x128xf32>
    %cst_5 = arith.constant 0.000000e+00 : f32
    %6 = vector.broadcast %cst_5 : f32 to vector<128x128xf32>
    %7 = arith.maximumf %5, %6 : vector<128x128xf32>
    %c0_6 = arith.constant 0 : index
    %c0_7 = arith.constant 0 : index
    %8 = vector.load %arg4[%c0_6, %c0_7] : memref<1x128xf32, #tpu.memory_space<vmem>>, vector<1x128xf32>
    %cst_8 = arith.constant dense<0.000000e+00> : vector<1x128xf32>
    %9 = tpu.matmul %8, %7, %cst_8 {dimension_numbers = #tpu.dot_dimension_numbers<[1], [0], [0], [1], [0, 0, 1, 1], [], []>} : vector<1x128xf32>, vector<128x128xf32>, vector<1x128xf32> -> vector<1x128xf32>
    %c0_9 = arith.constant 0 : index
    %c0_10 = arith.constant 0 : index
    %10 = memref.load %arg5[%c0_9, %c0_10] : memref<1x1xf32, #tpu.memory_space<smem>>
    %11 = vector.broadcast %10 : f32 to vector<1x128xf32>
    %12 = arith.addf %9, %11 : vector<1x128xf32>
    %cst_11 = arith.constant 0.000000e+00 : f32
    %13 = vector.broadcast %cst_11 : f32 to vector<1x128xf32>
    %14 = arith.subf %13, %12 : vector<1x128xf32>
    %15 = math.exp %14 : vector<1x128xf32>
    %cst_12 = arith.constant 1.000000e+00 : f32
    %16 = vector.broadcast %cst_12 : f32 to vector<1x128xf32>
    %17 = arith.addf %16, %15 : vector<1x128xf32>
    %18 = tpu.reciprocal %17 : vector<1x128xf32> -> vector<1x128xf32>
    %c0_13 = arith.constant 0 : index
    %c0_14 = arith.constant 0 : index
    %19 = vector.load %arg6[%c0_13, %c0_14] : memref<1x128xf32, #tpu.memory_space<vmem>>, vector<1x128xf32>
    tpu.vector_store %arg6[%c0_13, %c0_14], %18 {strides = array<i32>} : memref<1x128xf32, #tpu.memory_space<vmem>>, vector<1x128xf32>,
    return
  }
  func.func @transform_0(%arg0: i32) -> (i32, i32) {
    %c0_i32 = arith.constant 0 : i32
    %c0_i32_0 = arith.constant 0 : i32
    return %c0_i32, %arg0 : i32, i32
  }
  func.func @transform_1(%arg0: i32) -> (i32, i32) {
    %c0_i32 = arith.constant 0 : i32
    %c0_i32_0 = arith.constant 0 : i32
    %c0_i32_1 = arith.constant 0 : i32
    return %c0_i32, %c0_i32_0 : i32, i32
  }
  func.func @transform_2(%arg0: i32) -> (i32, i32) {
    %c0_i32 = arith.constant 0 : i32
    %c0_i32_0 = arith.constant 0 : i32
    %c0_i32_1 = arith.constant 0 : i32
    return %c0_i32, %c0_i32_0 : i32, i32
  }
  func.func @transform_3(%arg0: i32) -> (i32, i32) {
    %c0_i32 = arith.constant 0 : i32
    %c0_i32_0 = arith.constant 0 : i32
    %c0_i32_1 = arith.constant 0 : i32
    return %c0_i32, %c0_i32_0 : i32, i32
  }
  func.func @transform_4(%arg0: i32) -> (i32, i32) {
    %c0_i32 = arith.constant 0 : i32
    %c0_i32_0 = arith.constant 0 : i32
    %c0_i32_1 = arith.constant 0 : i32
    return %c0_i32, %c0_i32_0 : i32, i32
  }
  func.func @transform_5(%arg0: i32) -> (i32, i32) {
    %c0_i32 = arith.constant 0 : i32
    %c0_i32_0 = arith.constant 0 : i32
    return %c0_i32, %arg0 : i32, i32
  }
}

</mosaic_0001>

<llo_original>
// kernel: tpu_custom_call.1
$region0: #{tpu_custom_call.1}
  #allocation0 [shape = 'u32[]', space=smem, size = 0x4, offset = 0x4, fixed_abs, tag = 'smem constant byte address 0x4 - core index']
  #allocation1 [shape = 'u32[144,128]{1,0:T(1,128)}', space=vmem, size = 0x12000, scoped, tag = 'internal scratch']
  #allocation2 [shape = 'f32[1,1]{1,0:T(1,128)S(6)}', space=smem, size = 0x200, scoped, tag = 'scoped memory for tpu_custom_call.1']
  %s0 = inlined_call_operand.vmem [shape: f32[128,128], index: 0, kind: input, shape index: {}]
  %s1 = inlined_call_operand.hbm [shape: f32[128,128], index: 1, kind: input, shape index: {}]
  %s2 = inlined_call_operand.vmem [shape: f32[128,1], index: 2, kind: input, shape index: {}]
  %s3 = inlined_call_operand.vmem [shape: f32[1,128], index: 3, kind: input, shape index: {}]
  %s4 = inlined_call_operand.<no memory space> [shape: f32[1,1], index: 4, kind: input, shape index: {}]
  %s5 = inlined_call_operand.hbm [shape: f32[1,128], index: 5, kind: output, shape index: {}]
  %s6 = sld [smem:[#allocation0]]
  $region34: #{tpu_custom_call.1} parent=0
    _
  %s8 = ssub.s32 1, %s6
  %s9 = scalar_select 0, %s8, %s6
  %10 = sst [smem:[#allocation2]] %s4
  $region1: #{tpu_custom_call.1} parent=0
    #allocation3 [shape = 'u8[65536]{0}', space=vmem, size = 0x10000, scoped, tag = 'input window, operand 1, single buffered']
    #allocation4 [shape = 's32[1]{0}', space=sflag, size = 0x4, scoped, tag = 'scoped memory for tpu_custom_call.1']
    #allocation5 [shape = 's32[1]{0}', space=sflag, size = 0x4, scoped, tag = 'scoped memory for tpu_custom_call.1']
    #allocation6 [shape = 'u8[512]{0}', space=vmem, size = 0x400, scoped, tag = 'output window, operand 0, single buffered']
    %11 = vsyncpa [#allocation4], 0
    %12 = vsyncpa [#allocation5], 0
    // Predicated region
    $region2: #{tpu_custom_call.1} parent=1 // pred_check
      _
    $region3: #{tpu_custom_call.1} parent=1 // pred_check_branch
      %14 = sbr.rel (0) target = $region5
    $region4: #{tpu_custom_call.1} parent=1 // pred_region
      _
    $region5: #{tpu_custom_call.1} parent=1 // pred_fallthru
      _
    // Predicated region
    $region6: #{tpu_custom_call.1} parent=1 // pred_check
      _
    $region7: #{tpu_custom_call.1} parent=1 // pred_check_branch
      %16 = sbr.rel (0) target = $region9
    $region8: #{tpu_custom_call.1} parent=1 // pred_region
      %s18 = ssub.s32 2048, 2048
      %19 = vsyncadd [#allocation4], %s18
      %s20 = sshll.u32 [#allocation3], 4
      %s21 = int_to_ptr.vmem [resolvable:$true] %s20
      %26 = dma.hbm_to_vmem [thread:$0]  %s1, 2048, %s21, [#allocation4], 128, 128, 8
    $region9: #{tpu_custom_call.1} parent=1 // pred_fallthru
      _
    // Predicated region
    $region10: #{tpu_custom_call.1} parent=1 // pred_check
      _
    $region11: #{tpu_custom_call.1} parent=1 // pred_check_branch
      %28 = sbr.rel (0) target = $region13
    $region12: #{tpu_custom_call.1} parent=1 // pred_region
      _
    $region13: #{tpu_custom_call.1} parent=1 // pred_fallthru
      _
    // Predicated region
    $region14: #{tpu_custom_call.1} parent=1 // pred_check
      _
    $region15: #{tpu_custom_call.1} parent=1 // pred_check_branch
      %30 = sbr.rel (0) target = $region17
    $region16: #{tpu_custom_call.1} parent=1 // pred_region
      _
    $region17: #{tpu_custom_call.1} parent=1 // pred_fallthru
      _
    // Predicated region
    $region18: #{tpu_custom_call.1} parent=1 // pred_check
      _
    $region19: #{tpu_custom_call.1} parent=1 // pred_check_branch
      %32 = sbr.rel (0) target = $region21
    $region20: #{tpu_custom_call.1} parent=1 // pred_region
      _
    $region21: #{tpu_custom_call.1} parent=1 // pred_fallthru
      _
    // Predicated region
    $region22: #{tpu_custom_call.1} parent=1 // pred_check
      _
    $region23: #{tpu_custom_call.1} parent=1 // pred_check_branch
      %34 = sbr.rel (0) target = $region25
    $region24: #{tpu_custom_call.1} parent=1 // pred_region
      %35 = dma.done [#allocation4], 2048
    $region25: #{tpu_custom_call.1} parent=1 // pred_fallthru
      _
    %v36 = vld [vmem:[#allocation3] sm:$0xff]
    %v37 = vld [vmem:[#allocation3 + $0x8] sm:$0xff]
    %v38 = vld [vmem:[#allocation3 + $0x10] sm:$0xff]
    %v39 = vld [vmem:[#allocation3 + $0x18] sm:$0xff]
    %v40 = vld [vmem:[#allocation3 + $0x20] sm:$0xff]
    %v41 = vld [vmem:[#allocation3 + $0x28] sm:$0xff]
    %v42 = vld [vmem:[#allocation3 + $0x30] sm:$0xff]
    %v43 = vld [vmem:[#allocation3 + $0x38] sm:$0xff]
    %v44 = vld [vmem:[#allocation3 + $0x40] sm:$0xff]
    %v45 = vld [vmem:[#allocation3 + $0x48] sm:$0xff]
    %v46 = vld [vmem:[#allocation3 + $0x50] sm:$0xff]
    %v47 = vld [vmem:[#allocation3 + $0x58] sm:$0xff]
    %v48 = vld [vmem:[#allocation3 + $0x60] sm:$0xff]
    %v49 = vld [vmem:[#allocation3 + $0x68] sm:$0xff]
    %v50 = vld [vmem:[#allocation3 + $0x70] sm:$0xff]
    %v51 = vld [vmem:[#allocation3 + $0x78] sm:$0xff]
    %v52 = vld [vmem:[%s0] sm:$0xff]
    %v53 = vld [vmem:[%s0 + $0x8] sm:$0xff]
    %v54 = vld [vmem:[%s0 + $0x10] sm:$0xff]
    %v55 = vld [vmem:[%s0 + $0x18] sm:$0xff]
    %v56 = vld [vmem:[%s0 + $0x20] sm:$0xff]
    %v57 = vld [vmem:[%s0 + $0x28] sm:$0xff]
    %v58 = vld [vmem:[%s0 + $0x30] sm:$0xff]
    %v59 = vld [vmem:[%s0 + $0x38] sm:$0xff]
    %v60 = vld [vmem:[%s0 + $0x40] sm:$0xff]
    %v61 = vld [vmem:[%s0 + $0x48] sm:$0xff]
    %v62 = vld [vmem:[%s0 + $0x50] sm:$0xff]
    %v63 = vld [vmem:[%s0 + $0x58] sm:$0xff]
    %v64 = vld [vmem:[%s0 + $0x60] sm:$0xff]
    %v65 = vld [vmem:[%s0 + $0x68] sm:$0xff]
    %v66 = vld [vmem:[%s0 + $0x70] sm:$0xff]
    %v67 = vld [vmem:[%s0 + $0x78] sm:$0xff]
    %v68 = vld [vmem:[%s2] sm:$0xff]
    %v69 = vld [vmem:[%s2 + $0x8] sm:$0xff]
    %v70 = vld [vmem:[%s2 + $0x10] sm:$0xff]
    %v71 = vld [vmem:[%s2 + $0x18] sm:$0xff]
    %v72 = vld [vmem:[%s2 + $0x20] sm:$0xff]
    %v73 = vld [vmem:[%s2 + $0x28] sm:$0xff]
    %v74 = vld [vmem:[%s2 + $0x30] sm:$0xff]
    %v75 = vld [vmem:[%s2 + $0x38] sm:$0xff]
    %v76 = vld [vmem:[%s2 + $0x40] sm:$0xff]
    %v77 = vld [vmem:[%s2 + $0x48] sm:$0xff]
    %v78 = vld [vmem:[%s2 + $0x50] sm:$0xff]
    %v79 = vld [vmem:[%s2 + $0x58] sm:$0xff]
    %v80 = vld [vmem:[%s2 + $0x60] sm:$0xff]
    %v81 = vld [vmem:[%s2 + $0x68] sm:$0xff]
    %v82 = vld [vmem:[%s2 + $0x70] sm:$0xff]
    %v83 = vld [vmem:[%s2 + $0x78] sm:$0xff]
    %85 = vset.pattern.permute.xlu0 0
    %86 = vperm.xlu0 %85, %v68
    %v87 = vpop.permute.xlu0 %86
    %90 = vset.pattern.permute.xlu0 0
    %91 = vperm.xlu0 %90, %v69
    %v92 = vpop.permute.xlu0 %91
    %95 = vset.pattern.permute.xlu0 0
    %96 = vperm.xlu0 %95, %v70
    %v97 = vpop.permute.xlu0 %96
    %100 = vset.pattern.permute.xlu0 0
    %101 = vperm.xlu0 %100, %v71
    %v102 = vpop.permute.xlu0 %101
    %105 = vset.pattern.permute.xlu0 0
    %106 = vperm.xlu0 %105, %v72
    %v107 = vpop.permute.xlu0 %106
    %110 = vset.pattern.permute.xlu0 0
    %111 = vperm.xlu0 %110, %v73
    %v112 = vpop.permute.xlu0 %111
    %115 = vset.pattern.permute.xlu0 0
    %116 = vperm.xlu0 %115, %v74
    %v117 = vpop.permute.xlu0 %116
    %120 = vset.pattern.permute.xlu0 0
    %121 = vperm.xlu0 %120, %v75
    %v122 = vpop.permute.xlu0 %121
    %125 = vset.pattern.permute.xlu0 0
    %126 = vperm.xlu0 %125, %v76
    %v127 = vpop.permute.xlu0 %126
    %130 = vset.pattern.permute.xlu0 0
    %131 = vperm.xlu0 %130, %v77
    %v132 = vpop.permute.xlu0 %131
    %135 = vset.pattern.permute.xlu0 0
    %136 = vperm.xlu0 %135, %v78
    %v137 = vpop.permute.xlu0 %136
    %140 = vset.pattern.permute.xlu0 0
    %141 = vperm.xlu0 %140, %v79
    %v142 = vpop.permute.xlu0 %141
    %145 = vset.pattern.permute.xlu0 0
    %146 = vperm.xlu0 %145, %v80
    %v147 = vpop.permute.xlu0 %146
    %150 = vset.pattern.permute.xlu0 0
    %151 = vperm.xlu0 %150, %v81
    %v152 = vpop.permute.xlu0 %151
    %155 = vset.pattern.permute.xlu0 0
    %156 = vperm.xlu0 %155, %v82
    %v157 = vpop.permute.xlu0 %156
    %160 = vset.pattern.permute.xlu0 0
    %161 = vperm.xlu0 %160, %v83
    %v162 = vpop.permute.xlu0 %161
    %164 = vmatprep.subr.mxu0 0.0
    %165 = vmatpush1.msra.mxu0 %v67
    %166 = vmatprep.subr.mxu0 0.0
    %167 = vmatpush1.msra.mxu0 %v66
    %168 = vmatprep.subr.mxu0 0.0
    %169 = vmatpush1.msra.mxu0 %v65
    %170 = vmatprep.subr.mxu0 0.0
    %171 = vmatpush1.msra.mxu0 %v64
    %172 = vmatprep.subr.mxu0 0.0
    %173 = vmatpush1.msra.mxu0 %v63
    %174 = vmatprep.subr.mxu0 0.0
    %175 = vmatpush1.msra.mxu0 %v62
    %176 = vmatprep.subr.mxu0 0.0
    %177 = vmatpush1.msra.mxu0 %v61
    %178 = vmatprep.subr.mxu0 0.0
    %179 = vmatpush1.msra.mxu0 %v60
    %180 = vmatprep.subr.mxu0 0.0
    %181 = vmatpush1.msra.mxu0 %v59
    %182 = vmatprep.subr.mxu0 0.0
    %183 = vmatpush1.msra.mxu0 %v58
    %184 = vmatprep.subr.mxu0 0.0
    %185 = vmatpush1.msra.mxu0 %v57
    %186 = vmatprep.subr.mxu0 0.0
    %187 = vmatpush1.msra.mxu0 %v56
    %188 = vmatprep.subr.mxu0 0.0
    %189 = vmatpush1.msra.mxu0 %v55
    %190 = vmatprep.subr.mxu0 0.0
    %191 = vmatpush1.msra.mxu0 %v54
    %192 = vmatprep.subr.mxu0 0.0
    %193 = vmatpush1.msra.mxu0 %v53
    %194 = vmatprep.subr.mxu0 0.0
    %195 = vmatpush1.msra.mxu0 %v52
    %196 = vmatprep.subr.mxu0 0.0
    %197 = vmatpush2.msra.mxu0 0.0
    %198 = vmatprep.subr.mxu0 0.0
    %199 = vmatpush2.msra.mxu0 0.0
    %200 = vmatprep.subr.mxu0 0.0
    %201 = vmatpush2.msra.mxu0 0.0
    %202 = vmatprep.subr.mxu0 0.0
    %203 = vmatpush2.msra.mxu0 0.0
    %204 = vmatprep.subr.mxu0 0.0
    %205 = vmatpush2.msra.mxu0 0.0
    %206 = vmatprep.subr.mxu0 0.0
    %207 = vmatpush2.msra.mxu0 0.0
    %208 = vmatprep.subr.mxu0 0.0
    %209 = vmatpush2.msra.mxu0 0.0
    %210 = vmatprep.subr.mxu0 0.0
    %211 = vmatpush2.msra.mxu0 0.0
    %212 = vmatprep.subr.mxu0 0.0
    %213 = vmatpush2.msra.mxu0 0.0
    %214 = vmatprep.subr.mxu0 0.0
    %215 = vmatpush2.msra.mxu0 0.0
    %216 = vmatprep.subr.mxu0 0.0
    %217 = vmatpush2.msra.mxu0 0.0
    %218 = vmatprep.subr.mxu0 0.0
    %219 = vmatpush2.msra.mxu0 0.0
    %220 = vmatprep.subr.mxu0 0.0
    %221 = vmatpush2.msra.mxu0 0.0
    %222 = vmatprep.subr.mxu0 0.0
    %223 = vmatpush2.msra.mxu0 0.0
    %224 = vmatprep.subr.mxu0 0.0
    %225 = vmatpush2.msra.mxu0 0.0
    %226 = vmatprep.subr.mxu0 0.0
    %227 = vmatpush2.msra.mxu0 0.0
    %228 = vmatprep.mubr.f32.mxu0 0.0
    %229 = vmatmul.mubr.f32.gmra.mxu0 %v36
    %v230 = vpop.f32.mrf.mxu0
    %v231 = vadd.f32 %v87, %v230
    %v232 = vpop.f32.mrf.mxu0
    %233 = vmatprep.mubr.f32.mxu0 0.0
    %234 = vmatmul.mubr.f32.gmra.mxu0 %v37
    %v235 = vpop.f32.mrf.mxu0
    %v236 = vadd.f32 %v92, %v235
    %v237 = vpop.f32.mrf.mxu0
    %238 = vmatprep.mubr.f32.mxu0 0.0
    %239 = vmatmul.mubr.f32.gmra.mxu0 %v38
    %v240 = vpop.f32.mrf.mxu0
    %v241 = vadd.f32 %v97, %v240
    %v242 = vpop.f32.mrf.mxu0
    %243 = vmatprep.mubr.f32.mxu0 0.0
    %244 = vmatmul.mubr.f32.gmra.mxu0 %v39
    %v245 = vpop.f32.mrf.mxu0
    %v246 = vadd.f32 %v102, %v245
    %v247 = vpop.f32.mrf.mxu0
    %248 = vmatprep.mubr.f32.mxu0 0.0
    %249 = vmatmul.mubr.f32.gmra.mxu0 %v40
    %v250 = vpop.f32.mrf.mxu0
    %v251 = vadd.f32 %v107, %v250
    %v252 = vpop.f32.mrf.mxu0
    %253 = vmatprep.mubr.f32.mxu0 0.0
    %254 = vmatmul.mubr.f32.gmra.mxu0 %v41
    %v255 = vpop.f32.mrf.mxu0
    %v256 = vadd.f32 %v112, %v255
    %v257 = vpop.f32.mrf.mxu0
    %258 = vmatprep.mubr.f32.mxu0 0.0
    %259 = vmatmul.mubr.f32.gmra.mxu0 %v42
    %v260 = vpop.f32.mrf.mxu0
    %v261 = vadd.f32 %v117, %v260
    %v262 = vpop.f32.mrf.mxu0
    %263 = vmatprep.mubr.f32.mxu0 0.0
    %264 = vmatmul.mubr.f32.gmra.mxu0 %v43
    %v265 = vpop.f32.mrf.mxu0
    %v266 = vadd.f32 %v122, %v265
    %v267 = vpop.f32.mrf.mxu0
    %268 = vmatprep.mubr.f32.mxu0 0.0
    %269 = vmatmul.mubr.f32.gmra.mxu0 %v44
    %v270 = vpop.f32.mrf.mxu0
    %v271 = vadd.f32 %v127, %v270
    %v272 = vpop.f32.mrf.mxu0
    %273 = vmatprep.mubr.f32.mxu0 0.0
    %274 = vmatmul.mubr.f32.gmra.mxu0 %v45
    %v275 = vpop.f32.mrf.mxu0
    %v276 = vadd.f32 %v132, %v275
    %v277 = vpop.f32.mrf.mxu0
    %278 = vmatprep.mubr.f32.mxu0 0.0
    %279 = vmatmul.mubr.f32.gmra.mxu0 %v46
    %v280 = vpop.f32.mrf.mxu0
    %v281 = vadd.f32 %v137, %v280
    %v282 = vpop.f32.mrf.mxu0
    %283 = vmatprep.mubr.f32.mxu0 0.0
    %284 = vmatmul.mubr.f32.gmra.mxu0 %v47
    %v285 = vpop.f32.mrf.mxu0
    %v286 = vadd.f32 %v142, %v285
    %v287 = vpop.f32.mrf.mxu0
    %288 = vmatprep.mubr.f32.mxu0 0.0
    %289 = vmatmul.mubr.f32.gmra.mxu0 %v48
    %v290 = vpop.f32.mrf.mxu0
    %v291 = vadd.f32 %v147, %v290
    %v292 = vpop.f32.mrf.mxu0
    %293 = vmatprep.mubr.f32.mxu0 0.0
    %294 = vmatmul.mubr.f32.gmra.mxu0 %v49
    %v295 = vpop.f32.mrf.mxu0
    %v296 = vadd.f32 %v152, %v295
    %v297 = vpop.f32.mrf.mxu0
    %298 = vmatprep.mubr.f32.mxu0 0.0
    %299 = vmatmul.mubr.f32.gmra.mxu0 %v50
    %v300 = vpop.f32.mrf.mxu0
    %v301 = vadd.f32 %v157, %v300
    %v302 = vpop.f32.mrf.mxu0
    %303 = vmatprep.mubr.f32.mxu0 0.0
    %304 = vmatmul.mubr.f32.gmra.mxu0 %v51
    %v305 = vpop.f32.mrf.mxu0
    %v306 = vadd.f32 %v162, %v305
    %v307 = vpop.f32.mrf.mxu0
    %308 = vdwg.mxu0
    %v309 = vmax.f32 %v231, 0.0
    %v310 = vmax.f32 %v236, 0.0
    %v311 = vmax.f32 %v241, 0.0
    %v312 = vmax.f32 %v246, 0.0
    %v313 = vmax.f32 %v251, 0.0
    %v314 = vmax.f32 %v256, 0.0
    %v315 = vmax.f32 %v261, 0.0
    %v316 = vmax.f32 %v266, 0.0
    %v317 = vmax.f32 %v271, 0.0
    %v318 = vmax.f32 %v276, 0.0
    %v319 = vmax.f32 %v281, 0.0
    %v320 = vmax.f32 %v286, 0.0
    %v321 = vmax.f32 %v291, 0.0
    %v322 = vmax.f32 %v296, 0.0
    %v323 = vmax.f32 %v301, 0.0
    %v324 = vmax.f32 %v306, 0.0
    %v325 = vld [vmem:[%s3] sm:$0x1]
    %s326 = sld [smem:[#allocation2]]
    %v327 = vstv %s326
    %328 = vmatprep.subr.mxu0 0.0
    %329 = vmatpush1.msra.mxu0 %v324
    %330 = vmatprep.subr.mxu0 0.0
    %331 = vmatpush1.msra.mxu0 %v323
    %332 = vmatprep.subr.mxu0 0.0
    %333 = vmatpush1.msra.mxu0 %v322
    %334 = vmatprep.subr.mxu0 0.0
    %335 = vmatpush1.msra.mxu0 %v321
    %336 = vmatprep.subr.mxu0 0.0
    %337 = vmatpush1.msra.mxu0 %v320
    %338 = vmatprep.subr.mxu0 0.0
    %339 = vmatpush1.msra.mxu0 %v319
    %340 = vmatprep.subr.mxu0 0.0
    %341 = vmatpush1.msra.mxu0 %v318
    %342 = vmatprep.subr.mxu0 0.0
    %343 = vmatpush1.msra.mxu0 %v317
    %344 = vmatprep.subr.mxu0 0.0
    %345 = vmatpush1.msra.mxu0 %v316
    %346 = vmatprep.subr.mxu0 0.0
    %347 = vmatpush1.msra.mxu0 %v315
    %348 = vmatprep.subr.mxu0 0.0
    %349 = vmatpush1.msra.mxu0 %v314
    %350 = vmatprep.subr.mxu0 0.0
    %351 = vmatpush1.msra.mxu0 %v313
    %352 = vmatprep.subr.mxu0 0.0
    %353 = vmatpush1.msra.mxu0 %v312
    %354 = vmatprep.subr.mxu0 0.0
    %355 = vmatpush1.msra.mxu0 %v311
    %356 = vmatprep.subr.mxu0 0.0
    %357 = vmatpush1.msra.mxu0 %v310
    %358 = vmatprep.subr.mxu0 0.0
    %359 = vmatpush1.msra.mxu0 %v309
    %360 = vmatprep.subr.mxu0 0.0
    %361 = vmatpush2.msra.mxu0 0.0
    %362 = vmatprep.subr.mxu0 0.0
    %363 = vmatpush2.msra.mxu0 0.0
    %364 = vmatprep.subr.mxu0 0.0
    %365 = vmatpush2.msra.mxu0 0.0
    %366 = vmatprep.subr.mxu0 0.0
    %367 = vmatpush2.msra.mxu0 0.0
    %368 = vmatprep.subr.mxu0 0.0
    %369 = vmatpush2.msra.mxu0 0.0
    %370 = vmatprep.subr.mxu0 0.0
    %371 = vmatpush2.msra.mxu0 0.0
    %372 = vmatprep.subr.mxu0 0.0
    %373 = vmatpush2.msra.mxu0 0.0
    %374 = vmatprep.subr.mxu0 0.0
    %375 = vmatpush2.msra.mxu0 0.0
    %376 = vmatprep.subr.mxu0 0.0
    %377 = vmatpush2.msra.mxu0 0.0
    %378 = vmatprep.subr.mxu0 0.0
    %379 = vmatpush2.msra.mxu0 0.0
    %380 = vmatprep.subr.mxu0 0.0
    %381 = vmatpush2.msra.mxu0 0.0
    %382 = vmatprep.subr.mxu0 0.0
    %383 = vmatpush2.msra.mxu0 0.0
    %384 = vmatprep.subr.mxu0 0.0
    %385 = vmatpush2.msra.mxu0 0.0
    %386 = vmatprep.subr.mxu0 0.0
    %387 = vmatpush2.msra.mxu0 0.0
    %388 = vmatprep.subr.mxu0 0.0
    %389 = vmatpush2.msra.mxu0 0.0
    %390 = vmatprep.subr.mxu0 0.0
    %391 = vmatpush2.msra.mxu0 0.0
    %392 = vmatprep.mubr.f32.mxu0 0.0
    %393 = vmatmul.mubr.f32.gmra.mxu0 %v325
    %v394 = vpop.f32.mrf.mxu0
    %v395 = vadd.f32 %v327, %v394
    %v396 = vpop.f32.mrf.mxu0
    %397 = vdwg.mxu0
    %v398 = vsub.f32 0.0, %v395
    %v399 = vmul.f32 %v398, 1.442695
    %v400 = vpow.pop %v399
    %v401 = vadd.f32 %v400, 1.0
    %v402 = vrcp.pop %v401
    %403 = vst [vmem:[#allocation6] sm:$0x1] %v402
    // Predicated region
    $region26: #{tpu_custom_call.1} parent=1 // pred_check
      _
    $region27: #{tpu_custom_call.1} parent=1 // pred_check_branch
      %405 = sbr.rel (0) target = $region29
    $region28: #{tpu_custom_call.1} parent=1 // pred_region
      %s407 = ssub.s32 16, 16
      %408 = vsyncadd [#allocation5], %s407
      %s410 = sshll.u32 [#allocation6], 4
      %s411 = int_to_ptr.vmem [resolvable:$true] %s410
      %413 = dma.vmem_to_hbm [thread:$0]  %s411, 16, %s5, [#allocation5]
    $region29: #{tpu_custom_call.1} parent=1 // pred_fallthru
      _
    // Predicated region
    $region30: #{tpu_custom_call.1} parent=1 // pred_check
      _
    $region31: #{tpu_custom_call.1} parent=1 // pred_check_branch
      %415 = sbr.rel (0) target = $region33
    $region32: #{tpu_custom_call.1} parent=1 // pred_region
      %416 = dma.done [#allocation5], 16
    $region33: #{tpu_custom_call.1} parent=1 // pred_fallthru
      _
    %417 = vsyncpa [#allocation4], 1
    %418 = vsyncpa [#allocation5], 1

</llo_original>
